<compile_context>
chip_gen: v7x
topology: tpu7x:2x2x1
jax: 0.10.0
libtpu: 0.0.40
codegen_flags: <defaults>
</compile_context>

<pallas_src>
import functools

import jax
import jax.numpy as jnp
from jax.experimental import pallas as pl
from jax.experimental.pallas import tpu as pltpu


def _round_up(x, m):
    return ((x + m - 1) // m) * m


def _proj_kernel(x_ref, w_ref, shift_ref, out_ref):
    # x_ref:     (tile_r, pack*Cin)       packed point-feature rows
    # w_ref:     (pack*Cin, pack*Cemb)    block-diagonal, BN-scale already folded in
    # shift_ref: (1, pack*Cemb)           folded BatchNorm shift (tiled `pack` times)
    # out_ref:   (tile_r, pack*Cemb)      lane-dense (last dim is a multiple of 128)
    y = jnp.dot(x_ref[...], w_ref[...], preferred_element_type=jnp.float32)
    y = y + shift_ref[...]                                    # folded BatchNorm1d (eval)
    out_ref[...] = jnp.maximum(y, 0.0).astype(out_ref.dtype)  # ReLU


@functools.partial(jax.jit, static_argnames=("eps", "tile_n_max"))
def point_patch_embed_proj(feat, weight, gamma, beta, running_mean, running_var,
                           eps=1e-5, tile_n_max=4096):
    """Fused Linear(bias=False) + BatchNorm1d(eval) + ReLU.

    feat:   (N, Cin)   float32 — arbitrary N (small alignment pad handled internally)
    weight: (Cin, Cemb) — already transposed from PyTorch's (Cemb, Cin) layout
    gamma/beta/running_mean/running_var: (Cemb,)
    returns (N, Cemb) float32
    """
    N, Cin = feat.shape
    Cemb = weight.shape[1]

    # ---- Fold BatchNorm (eval) into the matmul: y = x @ (W*scale) + shift ----
    scale = gamma / jnp.sqrt(running_var + eps)
    shift = (beta - running_mean * scale).astype(jnp.float32)
    w_scaled = (weight * scale[None, :]).astype(jnp.float32)

    # ---- Lane-dense packing factor: pack consecutive points per 128-lane output row ----
    pack = 128 // Cemb if (Cemb <= 128 and 128 % Cemb == 0) else 1
    row_align = 8 * pack          # original-row alignment so packed sublane dim is mult of 8

    feat = feat.astype(jnp.float32)
    n_pad = _round_up(N, row_align)
    if n_pad != N:
        feat = jnp.pad(feat, ((0, n_pad - N), (0, 0)))

    rows = n_pad // pack          # packed rows (multiple of 8)
    tile_n = min(_round_up(tile_n_max, row_align), n_pad)
    tile_r = tile_n // pack       # packed rows per grid step (multiple of 8)
    grid = pl.cdiv(rows, tile_r)  # Pallas clips the final partial block on write

    # (N_pad, Cin) -> (N_pad/pack, pack*Cin): row-major bitcast view, free in XLA.
    x_view = feat.reshape(rows, pack * Cin)

    if pack > 1:
        # Block-diagonal replication of the folded weight: (pack*Cin, pack*Cemb).
        w_block = jnp.kron(jnp.eye(pack, dtype=jnp.float32), w_scaled)
        shift_block = jnp.tile(shift, pack).reshape(1, pack * Cemb)
    else:
        w_block = w_scaled
        shift_block = shift.reshape(1, Cemb)

    cost = pl.CostEstimate(
        flops=2 * n_pad * pack * Cin * Cemb,
        transcendentals=0,
        bytes_accessed=4 * n_pad * (Cin + Cemb) + 4 * int(pack * Cin * pack * Cemb),
    )

    out = pl.pallas_call(
        _proj_kernel,
        out_shape=jax.ShapeDtypeStruct((rows, pack * Cemb), jnp.float32),
        grid_spec=pltpu.PrefetchScalarGridSpec(
            num_scalar_prefetch=0,
            grid=(grid,),
            in_specs=[
                pl.BlockSpec((tile_r, pack * Cin), lambda i: (i, 0)),       # packed points
                pl.BlockSpec((pack * Cin, pack * Cemb), lambda i: (0, 0)),  # resident weight
                pl.BlockSpec((1, pack * Cemb), lambda i: (0, 0)),           # bn shift
            ],
            out_specs=pl.BlockSpec((tile_r, pack * Cemb), lambda i: (i, 0)),
        ),
        compiler_params=pltpu.CompilerParams(
            dimension_semantics=("parallel",)),
        cost_estimate=cost,
    )(x_view, w_block, shift_block)

    # (rows, pack*Cemb) -> (N_pad, Cemb): row-major bitcast view; drop alignment padding.
    out = out.reshape(n_pad, Cemb)
    return out[:N]


def point_patch_embed_forward(points, params):
    """Mirrors PointPatchEmbed.forward up to the executable `proj` stage."""
    coord, feat, offset = points
    feat = point_patch_embed_proj(
        feat,
        params["proj_weight"],
        params["bn_gamma"],
        params["bn_beta"],
        params["bn_running_mean"],
        params["bn_running_var"],
    )
    # TODO(synk): downstream PointTransformerSequence blocks omitted (see header comment).
    return [coord, feat, offset]


def _reference_proj(feat, weight, gamma, beta, mean, var, eps=1e-5):
    y = feat @ weight
    y = (y - mean) / jnp.sqrt(var + eps) * gamma + beta
    return jnp.maximum(y, 0.0)


if __name__ == "__main__":
    # Module hyperparameters (small, consistent with the reference __init__)
    in_channels = 6        # e.g. xyz + rgb point features
    embed_channels = 32
    num_points = 200       # deliberately NOT aligned — exercises the padding / clipping path

    key = jax.random.PRNGKey(0)
    k_feat, k_coord, k_w, k_g, k_b, k_m, k_v = jax.random.split(key, 7)

    # Inputs: points = (coord, feat, offset)
    coord = jax.random.normal(k_coord, (num_points, 3), dtype=jnp.float32)
    feat = jax.random.normal(k_feat, (num_points, in_channels), dtype=jnp.float32)
    offset = jnp.array([num_points], dtype=jnp.int32)

    # Deterministic synthetic parameters (shapes per nn.Linear / nn.BatchNorm1d in __init__)
    params = {
        # PyTorch Linear weight is (Cemb, Cin); store the transposed (Cin, Cemb) for x @ W.
        "proj_weight": jax.random.normal(k_w, (in_channels, embed_channels),
                                         dtype=jnp.float32) * 0.1,
        "bn_gamma": 1.0 + 0.05 * jax.random.normal(k_g, (embed_channels,), dtype=jnp.float32),
        "bn_beta": 0.05 * jax.random.normal(k_b, (embed_channels,), dtype=jnp.float32),
        "bn_running_mean": 0.1 * jax.random.normal(k_m, (embed_channels,), dtype=jnp.float32),
        "bn_running_var": 1.0 + 0.1 * jax.random.uniform(k_v, (embed_channels,),
                                                         dtype=jnp.float32),
    }

    out_coord, out_feat, out_offset = point_patch_embed_forward((coord, feat, offset), params)
    out_feat = jax.block_until_ready(out_feat)

    # Correctness check against a pure-JAX reference of the proj stage.
    ref = _reference_proj(feat, params["proj_weight"], params["bn_gamma"], params["bn_beta"],
                          params["bn_running_mean"], params["bn_running_var"])
    assert out_feat.shape == (num_points, embed_channels)
    assert jnp.allclose(out_feat, ref, atol=1e-5, rtol=1e-5), "mismatch vs reference"

    print("KERNEL_OK")
</pallas_src>

<mosaic_0001>
module attributes {stable_mosaic.version = 11 : i64} {
  func.func @_proj_kernel(%arg0: i32, %arg1: memref<56x24xf32, #tpu.memory_space<vmem>>, %arg2: memref<24x128xf32, #tpu.memory_space<vmem>>, %arg3: memref<1x128xf32, #tpu.memory_space<vmem>>, %arg4: memref<56x128xf32, #tpu.memory_space<vmem>>) attributes {dimension_semantics = [#tpu.dimension_semantics<parallel>], iteration_bounds = array<i64: 1>, scalar_prefetch = 0 : i64, scratch_operands = 0 : i64, tpu.core_type = #tpu.core_type<tc>, window_params = [{transform_indices = @transform_0, window_bounds = array<i64: 56, 24>}, {pipeline_mode = #tpu.pipeline_mode<synchronous>, transform_indices = @transform_1, window_bounds = array<i64: 24, 128>}, {pipeline_mode = #tpu.pipeline_mode<synchronous>, transform_indices = @transform_2, window_bounds = array<i64: 1, 128>}, {transform_indices = @transform_3, window_bounds = array<i64: 56, 128>}]} {
    %c0 = arith.constant 0 : index
    %c0_0 = arith.constant 0 : index
    %0 = vector.load %arg1[%c0, %c0_0] : memref<56x24xf32, #tpu.memory_space<vmem>>, vector<56x24xf32>
    %c0_1 = arith.constant 0 : index
    %c0_2 = arith.constant 0 : index
    %1 = vector.load %arg2[%c0_1, %c0_2] : memref<24x128xf32, #tpu.memory_space<vmem>>, vector<24x128xf32>
    %cst = arith.constant dense<0.000000e+00> : vector<56x128xf32>
    %2 = tpu.matmul %0, %1, %cst {dimension_numbers = #tpu.dot_dimension_numbers<[1], [0], [0], [1], [0, 0, 1, 1], [], []>} : vector<56x24xf32>, vector<24x128xf32>, vector<56x128xf32> -> vector<56x128xf32>
    %c0_3 = arith.constant 0 : index
    %c0_4 = arith.constant 0 : index
    %3 = vector.load %arg3[%c0_3, %c0_4] : memref<1x128xf32, #tpu.memory_space<vmem>>, vector<1x128xf32>
    %4 = vector.broadcast %3 : vector<1x128xf32> to vector<56x128xf32>
    %5 = arith.addf %2, %4 : vector<56x128xf32>
    %cst_5 = arith.constant 0.000000e+00 : f32
    %6 = vector.broadcast %cst_5 : f32 to vector<56x128xf32>
    %7 = arith.maximumf %5, %6 : vector<56x128xf32>
    %c0_6 = arith.constant 0 : index
    %c0_7 = arith.constant 0 : index
    %8 = vector.load %arg4[%c0_6, %c0_7] : memref<56x128xf32, #tpu.memory_space<vmem>>, vector<56x128xf32>
    tpu.vector_store %arg4[%c0_6, %c0_7], %7 {strides = array<i32>} : memref<56x128xf32, #tpu.memory_space<vmem>>, vector<56x128xf32>,
    return
  }
  func.func @transform_0(%arg0: i32) -> (i32, i32) {
    %c0_i32 = arith.constant 0 : i32
    %c0_i32_0 = arith.constant 0 : i32
    return %arg0, %c0_i32 : i32, i32
  }
  func.func @transform_1(%arg0: i32) -> (i32, i32) {
    %c0_i32 = arith.constant 0 : i32
    %c0_i32_0 = arith.constant 0 : i32
    %c0_i32_1 = arith.constant 0 : i32
    return %c0_i32, %c0_i32_0 : i32, i32
  }
  func.func @transform_2(%arg0: i32) -> (i32, i32) {
    %c0_i32 = arith.constant 0 : i32
    %c0_i32_0 = arith.constant 0 : i32
    %c0_i32_1 = arith.constant 0 : i32
    return %c0_i32, %c0_i32_0 : i32, i32
  }
  func.func @transform_3(%arg0: i32) -> (i32, i32) {
    %c0_i32 = arith.constant 0 : i32
    %c0_i32_0 = arith.constant 0 : i32
    return %arg0, %c0_i32 : i32, i32
  }
}

</mosaic_0001>

<llo_original>
// kernel: tile.8
$region0: #{tile.8}
  #allocation0 [shape = 's32[1]{0}', space=sflag, size = 0x4, scoped, tag = 'scoped memory for tile.8']
  %s0 = inlined_call_operand.vmem [shape: f32[32], index: 0, kind: input, shape index: {}]
  %s1 = inlined_call_operand.vmem [shape: f32[4,32], index: 1, kind: output, shape index: {}]
  // Predicated region
  $region2: #{tile.8} parent=0 // pred_check
    _
  $region3: #{tile.8} parent=0 // pred_check_branch
    %3 = sbr.rel (0) target = $region5
  $region4: #{tile.8} parent=0 // pred_region
    _
  $region5: #{tile.8} parent=0 // pred_fallthru
    _
  %v4 = vld [vmem:[%s0] ss:$0 sm:$0xff]
  %5 = vst [vmem:[%s1] sm:$0xf] %v4

// kernel: tile.9
$region0: #{tile.9}
  %s0 = inlined_call_operand.vmem [shape: f32[4,32], index: 0, kind: input, shape index: {}]
  %s1 = inlined_call_operand.vmem [shape: f32[1,128], index: 1, kind: output, shape index: {}]
  $region1: #{tile.9} parent=0
    #allocation0 [shape = 'u8[4096]{0}', space=vmem, size = 0x1000, scoped, tag = 'scoped mem for output reshape']
    #allocation1 [shape = 'u8[4096]{0}', space=vmem, size = 0x1000, scoped, tag = 'scoped mem for input reshape']
    %s3 = sshllo.u32 0, 4
    %v4 = vld [vmem:[%s0] sm:%s3]
    %5 = vst [vmem:[#allocation1] sm:%s3] %v4
    %v6 = vld [vmem:[#allocation1] sm:$0x1]
    %vm7 = vcmask 261120
    %8 = vst.msk [vmem:[#allocation0] sm:$0x1] %vm7, %v6
    %s9 = scalar_lea.vmem [#allocation1], 3
    %v10 = vld [vmem:[%s9] sm:$0x1]
    %11 = vrot.lane.b32.xlu0 %v10, 96
    %v12 = vpop.permute.xlu0 %11
    %vm13 = vcmask 1048320
    %14 = vst.msk [vmem:[#allocation0] sm:$0x1] %vm13, %v12
    %s15 = scalar_lea.vmem [#allocation1], 2
    %v16 = vld [vmem:[%s15] sm:$0x1]
    %17 = vrot.lane.b32.xlu0 %v16, 64
    %v18 = vpop.permute.xlu0 %17
    %vm19 = vcmask 785920
    %20 = vst.msk [vmem:[#allocation0] sm:$0x1] %vm19, %v18
    %s21 = scalar_lea.vmem [#allocation1], 1
    %v22 = vld [vmem:[%s21] sm:$0x1]
    %23 = vrot.lane.b32.xlu0 %v22, 32
    %v24 = vpop.permute.xlu0 %23
    %vm25 = vcmask 523520
    %26 = vst.msk [vmem:[#allocation0] sm:$0x1] %vm25, %v24
    %s28 = sshllo.u32 0, 1
    %v30 = vld [vmem:[#allocation0] sm:%s28]
    %s31 = sshllo.u32 0, 1
    %32 = vst [vmem:[%s1] sm:%s31] %v30

// kernel: point_patch_embed_proj.1
$region0: #{point_patch_embed_proj.1}
  #allocation0 [shape = 'u32[]', space=smem, size = 0x4, offset = 0x4, fixed_abs, tag = 'smem constant byte address 0x4 - core index']
  #allocation1 [shape = 'u32[144,128]{1,0:T(1,128)}', space=vmem, size = 0x12000, scoped, tag = 'internal scratch']
  %s0 = inlined_call_operand.vmem [shape: f32[56,24], index: 0, kind: input, shape index: {}]
  %s1 = inlined_call_operand.vmem [shape: f32[24,128], index: 1, kind: input, shape index: {}]
  %s2 = inlined_call_operand.vmem [shape: f32[1,128], index: 2, kind: input, shape index: {}]
  %s3 = inlined_call_operand.vmem [shape: f32[56,128], index: 3, kind: output, shape index: {}]
  %s4 = sld [smem:[#allocation0]]
  $region22: #{point_patch_embed_proj.1} parent=0
    _
  %s6 = ssub.s32 1, %s4
  %s7 = scalar_select 0, %s6, %s4
  // Predicated region
  $region2: #{point_patch_embed_proj.1} parent=0 // pred_check
    _
  $region3: #{point_patch_embed_proj.1} parent=0 // pred_check_branch
    %9 = sbr.rel (0) target = $region5
  $region4: #{point_patch_embed_proj.1} parent=0 // pred_region
    _
  $region5: #{point_patch_embed_proj.1} parent=0 // pred_fallthru
    _
  // Predicated region
  $region6: #{point_patch_embed_proj.1} parent=0 // pred_check
    _
  $region7: #{point_patch_embed_proj.1} parent=0 // pred_check_branch
    %11 = sbr.rel (0) target = $region9
  $region8: #{point_patch_embed_proj.1} parent=0 // pred_region
    _
  $region9: #{point_patch_embed_proj.1} parent=0 // pred_fallthru
    _
  // Predicated region
  $region10: #{point_patch_embed_proj.1} parent=0 // pred_check
    _
  $region11: #{point_patch_embed_proj.1} parent=0 // pred_check_branch
    %13 = sbr.rel (0) target = $region13
  $region12: #{point_patch_embed_proj.1} parent=0 // pred_region
    _
  $region13: #{point_patch_embed_proj.1} parent=0 // pred_fallthru
    _
  %v14 = vld [vmem:[%s0] sm:$0xff]
  %v15 = vld [vmem:[%s0 + $0x8] sm:$0xff]
  %v16 = vld [vmem:[%s0 + $0x10] sm:$0xff]
  %v17 = vld [vmem:[%s0 + $0x18] sm:$0xff]
  %v18 = vld [vmem:[%s0 + $0x20] sm:$0xff]
  %v19 = vld [vmem:[%s0 + $0x28] sm:$0xff]
  %v20 = vld [vmem:[%s0 + $0x30] sm:$0xff]
  %v21 = vld [vmem:[%s1] sm:$0xff]
  %v22 = vld [vmem:[%s1 + $0x8] sm:$0xff]
  %v23 = vld [vmem:[%s1 + $0x10] sm:$0xff]
  %v24 = vld [vmem:[%s2] sm:$0x1]
  %v26 = vlaneseq
  %v27 = vshrl.u32 %v26, 7
  %v28 = vsub.s32 0, %v27
  %v29 = vrot.slane %v24, %v28
  %vm31 = vcmask 195584
  %v33 = vsel %vm31, %v14, 0
  %v36 = vsel %vm31, %v15, 0
  %v39 = vsel %vm31, %v16, 0
  %v42 = vsel %vm31, %v17, 0
  %v45 = vsel %vm31, %v18, 0
  %v48 = vsel %vm31, %v19, 0
  %v51 = vsel %vm31, %v20, 0
  %53 = vmatprep.subr.mxu0 0.0
  %54 = vmatpush1.msra.mxu0 %v21
  %55 = vmatprep.subr.mxu0 0.0
  %56 = vmatpush1.msra.mxu0 %v22
  %57 = vmatprep.subr.mxu0 0.0
  %58 = vmatpush1.msra.mxu0 %v23
  %59 = vmatprep.subr.mxu0 0.0
  %60 = vmatpush1.msra.mxu0 0.0
  %61 = vmatprep.subr.mxu0 0.0
  %62 = vmatpush1.msra.mxu0 0.0
  %63 = vmatprep.subr.mxu0 0.0
  %64 = vmatpush1.msra.mxu0 0.0
  %65 = vmatprep.subr.mxu0 0.0
  %66 = vmatpush1.msra.mxu0 0.0
  %67 = vmatprep.subr.mxu0 0.0
  %68 = vmatpush1.msra.mxu0 0.0
  %69 = vmatprep.subr.mxu0 0.0
  %70 = vmatpush1.msra.mxu0 0.0
  %71 = vmatprep.subr.mxu0 0.0
  %72 = vmatpush1.msra.mxu0 0.0
  %73 = vmatprep.subr.mxu0 0.0
  %74 = vmatpush1.msra.mxu0 0.0
  %75 = vmatprep.subr.mxu0 0.0
  %76 = vmatpush1.msra.mxu0 0.0
  %77 = vmatprep.subr.mxu0 0.0
  %78 = vmatpush1.msra.mxu0 0.0
  %79 = vmatprep.subr.mxu0 0.0
  %80 = vmatpush1.msra.mxu0 0.0
  %81 = vmatprep.subr.mxu0 0.0
  %82 = vmatpush1.msra.mxu0 0.0
  %83 = vmatprep.subr.mxu0 0.0
  %84 = vmatpush1.msra.mxu0 0.0
  %85 = vmatprep.subr.mxu0 0.0
  %86 = vmatpush1.msra.mxu0 0.0
  %87 = vmatprep.subr.mxu0 0.0
  %88 = vmatpush1.msra.mxu0 0.0
  %89 = vmatprep.subr.mxu0 0.0
  %90 = vmatpush1.msra.mxu0 0.0
  %91 = vmatprep.subr.mxu0 0.0
  %92 = vmatpush1.msra.mxu0 0.0
  %93 = vmatprep.subr.mxu0 0.0
  %94 = vmatpush1.msra.mxu0 0.0
  %95 = vmatprep.subr.mxu0 0.0
  %96 = vmatpush1.msra.mxu0 0.0
  %97 = vmatprep.subr.mxu0 0.0
  %98 = vmatpush1.msra.mxu0 0.0
  %99 = vmatprep.subr.mxu0 0.0
  %100 = vmatpush1.msra.mxu0 0.0
  %101 = vmatprep.subr.mxu0 0.0
  %102 = vmatpush1.msra.mxu0 0.0
  %103 = vmatprep.subr.mxu0 0.0
  %104 = vmatpush1.msra.mxu0 0.0
  %105 = vmatprep.subr.mxu0 0.0
  %106 = vmatpush1.msra.mxu0 0.0
  %107 = vmatprep.subr.mxu0 0.0
  %108 = vmatpush1.msra.mxu0 0.0
  %109 = vmatprep.subr.mxu0 0.0
  %110 = vmatpush1.msra.mxu0 0.0
  %111 = vmatprep.subr.mxu0 0.0
  %112 = vmatpush1.msra.mxu0 0.0
  %113 = vmatprep.subr.mxu0 0.0
  %114 = vmatpush1.msra.mxu0 0.0
  %115 = vmatprep.subr.mxu0 0.0
  %116 = vmatpush1.msra.mxu0 0.0
  %117 = vmatprep.mubr.f32.mxu0 0.0
  %118 = vmatmul.mubr.f32.gmra.mrb[0].mxu0 %v33
  %v119 = vpop.f32.mrb[0].mxu0
  %v120 = vadd.f32 %v29, %v119
  %v121 = vpop.f32.mrb[0].mxu0
  %122 = vmatprep.mubr.f32.mxu0 0.0
  %123 = vmatmul.mubr.f32.gmra.mrb[0].mxu0 %v36
  %v124 = vpop.f32.mrb[0].mxu0
  %v125 = vadd.f32 %v29, %v124
  %v126 = vpop.f32.mrb[0].mxu0
  %127 = vmatprep.mubr.f32.mxu0 0.0
  %128 = vmatmul.mubr.f32.gmra.mrb[0].mxu0 %v39
  %v129 = vpop.f32.mrb[0].mxu0
  %v130 = vadd.f32 %v29, %v129
  %v131 = vpop.f32.mrb[0].mxu0
  %132 = vmatprep.mubr.f32.mxu0 0.0
  %133 = vmatmul.mubr.f32.gmra.mrb[0].mxu0 %v42
  %v134 = vpop.f32.mrb[0].mxu0
  %v135 = vadd.f32 %v29, %v134
  %v136 = vpop.f32.mrb[0].mxu0
  %137 = vmatprep.mubr.f32.mxu0 0.0
  %138 = vmatmul.mubr.f32.gmra.mrb[0].mxu0 %v45
  %v139 = vpop.f32.mrb[0].mxu0
  %v140 = vadd.f32 %v29, %v139
  %v141 = vpop.f32.mrb[0].mxu0
  %142 = vmatprep.mubr.f32.mxu0 0.0
  %143 = vmatmul.mubr.f32.gmra.mrb[0].mxu0 %v48
  %v144 = vpop.f32.mrb[0].mxu0
  %v145 = vadd.f32 %v29, %v144
  %v146 = vpop.f32.mrb[0].mxu0
  %147 = vmatprep.mubr.f32.mxu0 0.0
  %148 = vmatmul.mubr.f32.gmra.mrb[0].mxu0 %v51
  %v149 = vpop.f32.mrb[0].mxu0
  %v150 = vadd.f32 %v29, %v149
  %v151 = vpop.f32.mrb[0].mxu0
  %152 = vdwg.mxu0
  %v153 = vmax.f32 %v120, 0.0
  %v154 = vmax.f32 %v125, 0.0
  %v155 = vmax.f32 %v130, 0.0
  %v156 = vmax.f32 %v135, 0.0
  %v157 = vmax.f32 %v140, 0.0
  %v158 = vmax.f32 %v145, 0.0
  %v159 = vmax.f32 %v150, 0.0
  %160 = vst [vmem:[%s3] sm:$0xff] %v153
  %161 = vst [vmem:[%s3 + $0x8] sm:$0xff] %v154
  %162 = vst [vmem:[%s3 + $0x10] sm:$0xff] %v155
  %163 = vst [vmem:[%s3 + $0x18] sm:$0xff] %v156
  %164 = vst [vmem:[%s3 + $0x20] sm:$0xff] %v157
  %165 = vst [vmem:[%s3 + $0x28] sm:$0xff] %v158
  %166 = vst [vmem:[%s3 + $0x30] sm:$0xff] %v159
  // Predicated region
  $region14: #{point_patch_embed_proj.1} parent=0 // pred_check
    _
  $region15: #{point_patch_embed_proj.1} parent=0 // pred_check_branch
    %168 = sbr.rel (0) target = $region17
  $region16: #{point_patch_embed_proj.1} parent=0 // pred_region
    _
  $region17: #{point_patch_embed_proj.1} parent=0 // pred_fallthru
    _
  // Predicated region
  $region18: #{point_patch_embed_proj.1} parent=0 // pred_check
    _
  $region19: #{point_patch_embed_proj.1} parent=0 // pred_check_branch
    %170 = sbr.rel (0) target = $region21
  $region20: #{point_patch_embed_proj.1} parent=0 // pred_region
    _
  $region21: #{point_patch_embed_proj.1} parent=0 // pred_fallthru
    _

</llo_original>
